<compile_context>
chip_gen: v7x
topology: tpu7x:2x2x1
jax: 0.10.0
libtpu: 0.0.40
codegen_flags: <defaults>
</compile_context>

<pallas_src>
import numpy as np
import jax
import jax.numpy as jnp
from jax import lax
from jax.experimental import pallas as pl
from jax.experimental.pallas import tpu as pltpu

# ----------------------------- configuration --------------------------------
INPUT_SIZE = 16
PRE_HIDDEN = 8          # preprocess_layers = [8]
N_QUBITS = 4
Q_DEPTH = 3
POST_HIDDEN = 8         # postprocess_layers = [8]
OUTPUT_SIZE = 3
DIM = 2 ** N_QUBITS     # statevector dimension (16)
BATCH = 16

OUT_PAD = 8             # padded output width (sliced to OUTPUT_SIZE outside)

# ------------------------- packed parameter slab layout ----------------------
# One f32 slab of shape (72, 128); every operand starts at a sublane offset
# that is a multiple of 8 and at lane 0 (static, shift-free slices).
SLAB_ROWS = 72
SLAB_LANES = 128
_W0_R, _UT_R, _ZW_R, _W1_R, _WP1_R, _B_R = 0, 16, 32, 48, 56, 64

# TODO(synk): create_fully_connected_net is not provided by the reference
# source; it is implemented as Linear -> ReLU -> ... -> Linear (ReLU between
# hidden layers, linear output).  The registered `output_act_func` (Tanh) is
# never applied in the given forward(), so it is not applied here either.


# ------------------------------ Pallas kernel --------------------------------
def dressed_qnet_kernel(x_ref, slab_ref, o_ref):
    f32 = jnp.float32
    x = x_ref[...].astype(f32)                              # (bm, 16)

    # static, sublane-aligned views into the packed parameter slab
    w0  = slab_ref[_W0_R:_W0_R + INPUT_SIZE, 0:PRE_HIDDEN]   # (16, 8)
    ut  = slab_ref[_UT_R:_UT_R + DIM, 0:DIM]                 # (16, 16)  U^T
    zw  = slab_ref[_ZW_R:_ZW_R + DIM, 0:POST_HIDDEN]         # (16, 8)   zsign@wp0
    w1  = slab_ref[_W1_R:_W1_R + PRE_HIDDEN, 0:N_QUBITS]     # (8, 4)
    wp1 = slab_ref[_WP1_R:_WP1_R + POST_HIDDEN, 0:OUT_PAD]   # (8, 8) pad lanes = 0
    b0  = slab_ref[_B_R + 0:_B_R + 1, 0:PRE_HIDDEN]          # (1, 8)
    b1  = slab_ref[_B_R + 1:_B_R + 2, 0:N_QUBITS]            # (1, 4)
    bp0 = slab_ref[_B_R + 2:_B_R + 3, 0:POST_HIDDEN]         # (1, 8)
    bp1 = slab_ref[_B_R + 3:_B_R + 4, 0:OUT_PAD]             # (1, 8) pad lanes = 0

    # ---- pre_net: Linear -> ReLU -> Linear, then angle scale ----
    h = jnp.maximum(jnp.dot(x, w0, preferred_element_type=f32) + b0, 0.0)
    q_in = (jnp.dot(h, w1, preferred_element_type=f32) + b1) * (jnp.pi / 2.0)

    # ---- quantum circuit, batch-dependent part: H|0> then RY(theta) ----
    # a0 = (cos t - sin t)/sqrt2 = cos(t + pi/4);  a1 = (cos t + sin t)/sqrt2
    #    = sin(t + pi/4)   (exact angle-shift identity; 2 EUP pushes, no VPU mix)
    t = q_in * 0.5 + (jnp.pi / 4.0)
    a0 = jnp.cos(t)                 # |0> amplitude per wire, (bm, nq)
    a1 = jnp.sin(t)                 # |1> amplitude per wire, (bm, nq)
    d = a1 - a0

    # product state over DIM basis states; bit of wire i (wire 0 = MSB) comes
    # from an in-kernel iota (no parameter DMA needed).
    idx = lax.broadcasted_iota(jnp.int32, (1, DIM), 1)
    psi = jnp.ones((x.shape[0], DIM), f32)
    for i in range(N_QUBITS):       # static unroll over wires
        bit = ((idx >> (N_QUBITS - 1 - i)) & 1).astype(f32)   # (1, DIM)
        psi = psi * (a0[:, i:i + 1] + d[:, i:i + 1] * bit)

    # ---- batch-independent unitary, |.|^2, and <Z_i> folded into post_net ----
    phi = jnp.dot(psi, ut, preferred_element_type=f32)        # psi @ U^T
    probs = phi * phi
    hp = jnp.maximum(jnp.dot(probs, zw, preferred_element_type=f32) + bp0, 0.0)

    # ---- post_net output layer (8-lane padded weights, narrow store) ----
    o_ref[...] = (jnp.dot(hp, wp1, preferred_element_type=f32) + bp1
                  ).astype(o_ref.dtype)


# --------------------------- circuit-unitary glue ----------------------------
def _embed(gate, wire, width, n):
    """kron(I_{2^wire}, gate, I_{2^(n-wire-width)}) with wire 0 = MSB."""
    left = jnp.eye(2 ** wire, dtype=jnp.float32)
    right = jnp.eye(2 ** (n - wire - width), dtype=jnp.float32)
    return jnp.kron(jnp.kron(left, gate), right)


def _ry(theta):
    c = jnp.cos(theta / 2.0)
    s = jnp.sin(theta / 2.0)
    return jnp.stack([jnp.stack([c, -s]), jnp.stack([s, c])]).astype(jnp.float32)


_CNOT = jnp.array([[1, 0, 0, 0],
                   [0, 1, 0, 0],
                   [0, 0, 0, 1],
                   [0, 0, 1, 0]], dtype=jnp.float32)


def build_circuit_unitary(q_params, n_qubits, q_depth):
    """Batch-independent part of the qnode: q_depth x (entangler + RY layer)."""
    qw = q_params.reshape(q_depth, n_qubits)
    u = jnp.eye(2 ** n_qubits, dtype=jnp.float32)
    for k in range(q_depth):
        for i in range(0, n_qubits - 1, 2):
            u = _embed(_CNOT, i, 2, n_qubits) @ u
        for i in range(1, n_qubits - 1, 2):
            u = _embed(_CNOT, i, 2, n_qubits) @ u
        for i in range(n_qubits):
            u = _embed(_ry(qw[k, i]), i, 1, n_qubits) @ u
    return u


def pack_param_slab(w0, b0, w1, b1, ut, zw, bp0, wp1, bp1):
    """Pack all kernel parameters into one (72, 128) f32 slab (single DMA)."""
    slab = np.zeros((SLAB_ROWS, SLAB_LANES), np.float32)
    slab[_W0_R:_W0_R + INPUT_SIZE, 0:PRE_HIDDEN] = np.asarray(w0)
    slab[_UT_R:_UT_R + DIM, 0:DIM] = np.asarray(ut)
    slab[_ZW_R:_ZW_R + DIM, 0:POST_HIDDEN] = np.asarray(zw)
    slab[_W1_R:_W1_R + PRE_HIDDEN, 0:N_QUBITS] = np.asarray(w1)
    slab[_WP1_R:_WP1_R + POST_HIDDEN, 0:OUTPUT_SIZE] = np.asarray(wp1)
    slab[_B_R + 0, 0:PRE_HIDDEN] = np.asarray(b0).ravel()
    slab[_B_R + 1, 0:N_QUBITS] = np.asarray(b1).ravel()
    slab[_B_R + 2, 0:POST_HIDDEN] = np.asarray(bp0).ravel()
    slab[_B_R + 3, 0:OUTPUT_SIZE] = np.asarray(bp1).ravel()
    return jnp.asarray(slab)


# --------------------------------- wrapper -----------------------------------
def _round8(n):
    return ((n + 7) // 8) * 8


def _tile_rows(b):
    """Pick batch-tile rows (always a multiple of 8; batch is padded to it).

    * b <= 64: one grid step -- no per-step overhead.
    * larger b: >=2 'parallel' steps (v7x dual TensorCores each get a stream)
      with <=~1024 rows per step, which keeps per-step overhead amortized and
      per-tile VMEM trivial on every generation (no tiny-divisor fallback,
      no single giant tile).
    """
    if b <= 64:
        return _round8(b)
    n_steps = max(2, pl.cdiv(b, 1024))
    return _round8(pl.cdiv(b, n_steps))


def dressed_quantum_net_forward(x, slab, out_dtype=jnp.float32):
    """x: (batch, 16) float array (f32 or bf16; cast to f32 inside the kernel).

    out_dtype=jnp.bfloat16 halves output writeback on the mem-bound path; all
    in-kernel math stays f32.
    """
    b_total = x.shape[0]
    bm = _tile_rows(b_total)
    n_steps = pl.cdiv(b_total, bm)
    b_pad = n_steps * bm
    if b_pad != b_total:
        # zero padding: padded rows are independent, finite, and sliced off.
        x = jnp.pad(x, ((0, b_pad - b_total), (0, 0)))

    out_padded = pl.pallas_call(
        dressed_qnet_kernel,
        out_shape=jax.ShapeDtypeStruct((b_pad, OUT_PAD), out_dtype),
        grid_spec=pltpu.PrefetchScalarGridSpec(
            num_scalar_prefetch=0,
            grid=(n_steps,),
            in_specs=[
                pl.BlockSpec((bm, INPUT_SIZE), lambda i: (i, 0)),
                pl.BlockSpec((SLAB_ROWS, SLAB_LANES), lambda i: (0, 0)),
            ],
            out_specs=pl.BlockSpec((bm, OUT_PAD), lambda i: (i, 0)),
        ),
        compiler_params=pltpu.CompilerParams(
            dimension_semantics=("parallel",)),
    )(x, slab)
    return out_padded[:b_total, :OUTPUT_SIZE]


# ------------------------- pure-JAX reference (check) ------------------------
def reference_forward(x, raw):
    (w0, b0, w1, b1, ut, zsign, wp0, bp0, wp1, bp1) = raw
    h = jnp.maximum(x @ w0 + b0, 0.0)
    q_in = (h @ w1 + b1) * (jnp.pi / 2.0)
    c, s = jnp.cos(q_in / 2), jnp.sin(q_in / 2)
    a0 = (c - s) / jnp.sqrt(2.0)
    a1 = (c + s) / jnp.sqrt(2.0)
    idx = np.arange(DIM)
    psi = jnp.ones((x.shape[0], DIM), jnp.float32)
    for i in range(N_QUBITS):
        bit = jnp.asarray(((idx >> (N_QUBITS - 1 - i)) & 1)
                          .astype(np.float32))[None, :]
        psi = psi * (a0[:, i:i + 1] * (1.0 - bit) + a1[:, i:i + 1] * bit)
    probs = (psi @ ut) ** 2
    q_out = probs @ zsign
    hp = jnp.maximum(q_out @ wp0 + bp0, 0.0)
    return hp @ wp1 + bp1


# ----------------------------------- main ------------------------------------
if __name__ == "__main__":
    key = jax.random.PRNGKey(0)
    ks = jax.random.split(key, 12)

    # deterministic parameter init (weight_init == standard_normal)
    w0 = jax.random.normal(ks[0], (INPUT_SIZE, PRE_HIDDEN), jnp.float32)
    b0 = 0.1 * jax.random.normal(ks[1], (1, PRE_HIDDEN), jnp.float32)
    w1 = jax.random.normal(ks[2], (PRE_HIDDEN, N_QUBITS), jnp.float32)
    b1 = 0.1 * jax.random.normal(ks[3], (1, N_QUBITS), jnp.float32)
    wp0 = jax.random.normal(ks[4], (N_QUBITS, POST_HIDDEN), jnp.float32)
    bp0 = 0.1 * jax.random.normal(ks[5], (1, POST_HIDDEN), jnp.float32)
    wp1 = jax.random.normal(ks[6], (POST_HIDDEN, OUTPUT_SIZE), jnp.float32)
    bp1 = 0.1 * jax.random.normal(ks[7], (1, OUTPUT_SIZE), jnp.float32)
    q_params = 0.01 * jax.random.normal(ks[8], (Q_DEPTH * N_QUBITS,), jnp.float32)

    # batch-independent circuit unitary (real), Z-sign table, and folds
    u = build_circuit_unitary(q_params, N_QUBITS, Q_DEPTH)
    ut = u.T                                            # psi @ U^T == U @ psi
    idx = np.arange(DIM)
    bits_np = np.stack(
        [((idx >> (N_QUBITS - 1 - i)) & 1).astype(np.float32)
         for i in range(N_QUBITS)], axis=0)             # (nq, DIM), wire 0 = MSB
    zsign = jnp.asarray((1.0 - 2.0 * bits_np).T)        # (DIM, nq), <Z> signs
    zw = zsign @ wp0                                    # fold <Z> map into post_net

    slab = pack_param_slab(w0, b0, w1, b1, ut, zw, bp0, wp1, bp1)
    raw = (w0, b0, w1, b1, ut, zsign, wp0, bp0, wp1, bp1)

    # --- small batch: single grid step ---
    x = jax.random.normal(ks[9], (BATCH, INPUT_SIZE), jnp.float32)
    out = jax.block_until_ready(dressed_quantum_net_forward(x, slab))
    ref = reference_forward(x, raw)
    np.testing.assert_allclose(np.asarray(out), np.asarray(ref),
                               rtol=1e-4, atol=1e-4)

    # --- awkward batch: exercises zero-padding + 2-step 'parallel' grid ---
    x2 = jax.random.normal(ks[10], (100, INPUT_SIZE), jnp.float32)
    out2 = jax.block_until_ready(dressed_quantum_net_forward(x2, slab))
    ref2 = reference_forward(x2, raw)
    np.testing.assert_allclose(np.asarray(out2), np.asarray(ref2),
                               rtol=1e-4, atol=1e-4)

    print("KERNEL_OK")
</pallas_src>

<mosaic_0001>
module attributes {stable_mosaic.version = 11 : i64} {
  func.func @dressed_qnet_kernel(%arg0: i32, %arg1: memref<16x16xf32, #tpu.memory_space<vmem>>, %arg2: memref<72x128xf32, #tpu.memory_space<vmem>>, %arg3: memref<16x8xf32, #tpu.memory_space<vmem>>) attributes {dimension_semantics = [#tpu.dimension_semantics<parallel>], iteration_bounds = array<i64: 1>, scalar_prefetch = 0 : i64, scratch_operands = 0 : i64, tpu.core_type = #tpu.core_type<tc>, window_params = [{transform_indices = @transform_0, window_bounds = array<i64: 16, 16>}, {pipeline_mode = #tpu.pipeline_mode<synchronous>, transform_indices = @transform_1, window_bounds = array<i64: 72, 128>}, {transform_indices = @transform_2, window_bounds = array<i64: 16, 8>}]} {
    %c0 = arith.constant 0 : index
    %c0_0 = arith.constant 0 : index
    %0 = vector.load %arg1[%c0, %c0_0] : memref<16x16xf32, #tpu.memory_space<vmem>>, vector<16x16xf32>
    %c0_1 = arith.constant 0 : index
    %c0_2 = arith.constant 0 : index
    %1 = vector.load %arg2[%c0_1, %c0_2] : memref<72x128xf32, #tpu.memory_space<vmem>>, vector<16x8xf32>
    %c16 = arith.constant 16 : index
    %c0_3 = arith.constant 0 : index
    %2 = vector.load %arg2[%c16, %c0_3] : memref<72x128xf32, #tpu.memory_space<vmem>>, vector<16x16xf32>
    %c32 = arith.constant 32 : index
    %c0_4 = arith.constant 0 : index
    %3 = vector.load %arg2[%c32, %c0_4] : memref<72x128xf32, #tpu.memory_space<vmem>>, vector<16x8xf32>
    %c48 = arith.constant 48 : index
    %c0_5 = arith.constant 0 : index
    %4 = vector.load %arg2[%c48, %c0_5] : memref<72x128xf32, #tpu.memory_space<vmem>>, vector<8x4xf32>
    %c56 = arith.constant 56 : index
    %c0_6 = arith.constant 0 : index
    %5 = vector.load %arg2[%c56, %c0_6] : memref<72x128xf32, #tpu.memory_space<vmem>>, vector<8x8xf32>
    %c64 = arith.constant 64 : index
    %c0_7 = arith.constant 0 : index
    %6 = vector.load %arg2[%c64, %c0_7] : memref<72x128xf32, #tpu.memory_space<vmem>>, vector<1x8xf32>
    %c65 = arith.constant 65 : index
    %c0_8 = arith.constant 0 : index
    %7 = vector.load %arg2[%c65, %c0_8] : memref<72x128xf32, #tpu.memory_space<vmem>>, vector<1x4xf32>
    %c66 = arith.constant 66 : index
    %c0_9 = arith.constant 0 : index
    %8 = vector.load %arg2[%c66, %c0_9] : memref<72x128xf32, #tpu.memory_space<vmem>>, vector<1x8xf32>
    %c67 = arith.constant 67 : index
    %c0_10 = arith.constant 0 : index
    %9 = vector.load %arg2[%c67, %c0_10] : memref<72x128xf32, #tpu.memory_space<vmem>>, vector<1x8xf32>
    %cst = arith.constant dense<0.000000e+00> : vector<16x8xf32>
    %10 = tpu.matmul %0, %1, %cst {dimension_numbers = #tpu.dot_dimension_numbers<[1], [0], [0], [1], [0, 0, 1, 1], [], []>} : vector<16x16xf32>, vector<16x8xf32>, vector<16x8xf32> -> vector<16x8xf32>
    %11 = vector.broadcast %6 : vector<1x8xf32> to vector<16x8xf32>
    %12 = arith.addf %10, %11 : vector<16x8xf32>
    %cst_11 = arith.constant 0.000000e+00 : f32
    %13 = vector.broadcast %cst_11 : f32 to vector<16x8xf32>
    %14 = arith.maximumf %12, %13 : vector<16x8xf32>
    %cst_12 = arith.constant dense<0.000000e+00> : vector<16x4xf32>
    %15 = tpu.matmul %14, %4, %cst_12 {dimension_numbers = #tpu.dot_dimension_numbers<[1], [0], [0], [1], [0, 0, 1, 1], [], []>} : vector<16x8xf32>, vector<8x4xf32>, vector<16x4xf32> -> vector<16x4xf32>
    %16 = vector.broadcast %7 : vector<1x4xf32> to vector<16x4xf32>
    %17 = arith.addf %15, %16 : vector<16x4xf32>
    %cst_13 = arith.constant 1.57079637 : f32
    %18 = vector.broadcast %cst_13 : f32 to vector<16x4xf32>
    %19 = arith.mulf %17, %18 : vector<16x4xf32>
    %cst_14 = arith.constant 5.000000e-01 : f32
    %20 = vector.broadcast %cst_14 : f32 to vector<16x4xf32>
    %21 = arith.mulf %19, %20 : vector<16x4xf32>
    %cst_15 = arith.constant 0.785398185 : f32
    %22 = vector.broadcast %cst_15 : f32 to vector<16x4xf32>
    %23 = arith.addf %21, %22 : vector<16x4xf32>
    %24 = math.cos %23 : vector<16x4xf32>
    %25 = math.sin %23 : vector<16x4xf32>
    %26 = arith.subf %25, %24 : vector<16x4xf32>
    %27 = tpu.iota {dimensions = array<i32: 1>} : vector<1x16xi32>
    %cst_16 = arith.constant 1.000000e+00 : f32
    %28 = vector.broadcast %cst_16 : f32 to vector<16x16xf32>
    %c3_i32 = arith.constant 3 : i32
    %29 = vector.broadcast %c3_i32 : i32 to vector<1x16xi32>
    %30 = arith.shrsi %27, %29 : vector<1x16xi32>
    %c1_i32 = arith.constant 1 : i32
    %31 = vector.broadcast %c1_i32 : i32 to vector<1x16xi32>
    %32 = arith.andi %30, %31 : vector<1x16xi32>
    %33 = arith.sitofp %32 : vector<1x16xi32> to vector<1x16xf32>
    %34 = vector.extract_strided_slice %24 {offsets = [0, 0], sizes = [16, 1], strides = [1, 1]} : vector<16x4xf32> to vector<16x1xf32>
    %35 = vector.extract_strided_slice %26 {offsets = [0, 0], sizes = [16, 1], strides = [1, 1]} : vector<16x4xf32> to vector<16x1xf32>
    %36 = vector.broadcast %35 : vector<16x1xf32> to vector<16x16xf32>
    %37 = vector.broadcast %33 : vector<1x16xf32> to vector<16x16xf32>
    %38 = arith.mulf %36, %37 : vector<16x16xf32>
    %39 = vector.broadcast %34 : vector<16x1xf32> to vector<16x16xf32>
    %40 = arith.addf %39, %38 : vector<16x16xf32>
    %41 = arith.mulf %28, %40 : vector<16x16xf32>
    %c2_i32 = arith.constant 2 : i32
    %42 = vector.broadcast %c2_i32 : i32 to vector<1x16xi32>
    %43 = arith.shrsi %27, %42 : vector<1x16xi32>
    %c1_i32_17 = arith.constant 1 : i32
    %44 = vector.broadcast %c1_i32_17 : i32 to vector<1x16xi32>
    %45 = arith.andi %43, %44 : vector<1x16xi32>
    %46 = arith.sitofp %45 : vector<1x16xi32> to vector<1x16xf32>
    %47 = vector.extract_strided_slice %24 {offsets = [0, 1], sizes = [16, 1], strides = [1, 1]} : vector<16x4xf32> to vector<16x1xf32>
    %48 = vector.extract_strided_slice %26 {offsets = [0, 1], sizes = [16, 1], strides = [1, 1]} : vector<16x4xf32> to vector<16x1xf32>
    %49 = vector.broadcast %48 : vector<16x1xf32> to vector<16x16xf32>
    %50 = vector.broadcast %46 : vector<1x16xf32> to vector<16x16xf32>
    %51 = arith.mulf %49, %50 : vector<16x16xf32>
    %52 = vector.broadcast %47 : vector<16x1xf32> to vector<16x16xf32>
    %53 = arith.addf %52, %51 : vector<16x16xf32>
    %54 = arith.mulf %41, %53 : vector<16x16xf32>
    %c1_i32_18 = arith.constant 1 : i32
    %55 = vector.broadcast %c1_i32_18 : i32 to vector<1x16xi32>
    %56 = arith.shrsi %27, %55 : vector<1x16xi32>
    %c1_i32_19 = arith.constant 1 : i32
    %57 = vector.broadcast %c1_i32_19 : i32 to vector<1x16xi32>
    %58 = arith.andi %56, %57 : vector<1x16xi32>
    %59 = arith.sitofp %58 : vector<1x16xi32> to vector<1x16xf32>
    %60 = vector.extract_strided_slice %24 {offsets = [0, 2], sizes = [16, 1], strides = [1, 1]} : vector<16x4xf32> to vector<16x1xf32>
    %61 = vector.extract_strided_slice %26 {offsets = [0, 2], sizes = [16, 1], strides = [1, 1]} : vector<16x4xf32> to vector<16x1xf32>
    %62 = vector.broadcast %61 : vector<16x1xf32> to vector<16x16xf32>
    %63 = vector.broadcast %59 : vector<1x16xf32> to vector<16x16xf32>
    %64 = arith.mulf %62, %63 : vector<16x16xf32>
    %65 = vector.broadcast %60 : vector<16x1xf32> to vector<16x16xf32>
    %66 = arith.addf %65, %64 : vector<16x16xf32>
    %67 = arith.mulf %54, %66 : vector<16x16xf32>
    %c0_i32 = arith.constant 0 : i32
    %68 = vector.broadcast %c0_i32 : i32 to vector<1x16xi32>
    %69 = arith.shrsi %27, %68 : vector<1x16xi32>
    %c1_i32_20 = arith.constant 1 : i32
    %70 = vector.broadcast %c1_i32_20 : i32 to vector<1x16xi32>
    %71 = arith.andi %69, %70 : vector<1x16xi32>
    %72 = arith.sitofp %71 : vector<1x16xi32> to vector<1x16xf32>
    %73 = vector.extract_strided_slice %24 {offsets = [0, 3], sizes = [16, 1], strides = [1, 1]} : vector<16x4xf32> to vector<16x1xf32>
    %74 = vector.extract_strided_slice %26 {offsets = [0, 3], sizes = [16, 1], strides = [1, 1]} : vector<16x4xf32> to vector<16x1xf32>
    %75 = vector.broadcast %74 : vector<16x1xf32> to vector<16x16xf32>
    %76 = vector.broadcast %72 : vector<1x16xf32> to vector<16x16xf32>
    %77 = arith.mulf %75, %76 : vector<16x16xf32>
    %78 = vector.broadcast %73 : vector<16x1xf32> to vector<16x16xf32>
    %79 = arith.addf %78, %77 : vector<16x16xf32>
    %80 = arith.mulf %67, %79 : vector<16x16xf32>
    %cst_21 = arith.constant dense<0.000000e+00> : vector<16x16xf32>
    %81 = tpu.matmul %80, %2, %cst_21 {dimension_numbers = #tpu.dot_dimension_numbers<[1], [0], [0], [1], [0, 0, 1, 1], [], []>} : vector<16x16xf32>, vector<16x16xf32>, vector<16x16xf32> -> vector<16x16xf32>
    %82 = arith.mulf %81, %81 : vector<16x16xf32>
    %cst_22 = arith.constant dense<0.000000e+00> : vector<16x8xf32>
    %83 = tpu.matmul %82, %3, %cst_22 {dimension_numbers = #tpu.dot_dimension_numbers<[1], [0], [0], [1], [0, 0, 1, 1], [], []>} : vector<16x16xf32>, vector<16x8xf32>, vector<16x8xf32> -> vector<16x8xf32>
    %84 = vector.broadcast %8 : vector<1x8xf32> to vector<16x8xf32>
    %85 = arith.addf %83, %84 : vector<16x8xf32>
    %cst_23 = arith.constant 0.000000e+00 : f32
    %86 = vector.broadcast %cst_23 : f32 to vector<16x8xf32>
    %87 = arith.maximumf %85, %86 : vector<16x8xf32>
    %cst_24 = arith.constant dense<0.000000e+00> : vector<16x8xf32>
    %88 = tpu.matmul %87, %5, %cst_24 {dimension_numbers = #tpu.dot_dimension_numbers<[1], [0], [0], [1], [0, 0, 1, 1], [], []>} : vector<16x8xf32>, vector<8x8xf32>, vector<16x8xf32> -> vector<16x8xf32>
    %89 = vector.broadcast %9 : vector<1x8xf32> to vector<16x8xf32>
    %90 = arith.addf %88, %89 : vector<16x8xf32>
    %c0_25 = arith.constant 0 : index
    %c0_26 = arith.constant 0 : index
    %91 = vector.load %arg3[%c0_25, %c0_26] : memref<16x8xf32, #tpu.memory_space<vmem>>, vector<16x8xf32>
    tpu.vector_store %arg3[%c0_25, %c0_26], %90 {strides = array<i32>} : memref<16x8xf32, #tpu.memory_space<vmem>>, vector<16x8xf32>,
    return
  }
  func.func @transform_0(%arg0: i32) -> (i32, i32) {
    %c0_i32 = arith.constant 0 : i32
    %c0_i32_0 = arith.constant 0 : i32
    return %arg0, %c0_i32 : i32, i32
  }
  func.func @transform_1(%arg0: i32) -> (i32, i32) {
    %c0_i32 = arith.constant 0 : i32
    %c0_i32_0 = arith.constant 0 : i32
    %c0_i32_1 = arith.constant 0 : i32
    return %c0_i32, %c0_i32_0 : i32, i32
  }
  func.func @transform_2(%arg0: i32) -> (i32, i32) {
    %c0_i32 = arith.constant 0 : i32
    %c0_i32_0 = arith.constant 0 : i32
    return %arg0, %c0_i32 : i32, i32
  }
}

</mosaic_0001>

<llo_original>
// kernel: tpu_custom_call.1
$region0: #{tpu_custom_call.1}
  #allocation0 [shape = 'u32[]', space=smem, size = 0x4, offset = 0x4, fixed_abs, tag = 'smem constant byte address 0x4 - core index']
  #allocation1 [shape = 'u32[144,128]{1,0:T(1,128)}', space=vmem, size = 0x12000, scoped, tag = 'internal scratch']
  %s0 = inlined_call_operand.hbm [shape: f32[16,16], index: 0, kind: input, shape index: {}]
  %s1 = inlined_call_operand.hbm [shape: f32[72,128], index: 1, kind: input, shape index: {}]
  %s2 = inlined_call_operand.vmem [shape: f32[16,8], index: 2, kind: output, shape index: {}]
  %s3 = sld [smem:[#allocation0]]
  $region26: #{tpu_custom_call.1} parent=0
    _
  %s5 = ssub.s32 1, %s3
  %s6 = scalar_select 0, %s5, %s3
  $region1: #{tpu_custom_call.1} parent=0
    #allocation2 [shape = 'u8[8192]{0}', space=vmem, size = 0x2000, scoped, tag = 'input window, operand 0, single buffered']
    #allocation3 [shape = 's32[1]{0}', space=sflag, size = 0x4, scoped, tag = 'scoped memory for tpu_custom_call.1']
    #allocation4 [shape = 'u8[36864]{0}', space=vmem, size = 0x9000, scoped, tag = 'input window, operand 1, single buffered']
    #allocation5 [shape = 's32[1]{0}', space=sflag, size = 0x4, scoped, tag = 'scoped memory for tpu_custom_call.1']
    %7 = vsyncpa [#allocation3], 0
    %8 = vsyncpa [#allocation5], 0
    // Predicated region
    $region2: #{tpu_custom_call.1} parent=1 // pred_check
      _
    $region3: #{tpu_custom_call.1} parent=1 // pred_check_branch
      %10 = sbr.rel (0) target = $region5
    $region4: #{tpu_custom_call.1} parent=1 // pred_region
      %s12 = ssub.s32 256, 256
      %13 = vsyncadd [#allocation3], %s12
      %s14 = sshll.u32 [#allocation2], 4
      %s15 = int_to_ptr.vmem [resolvable:$true] %s14
      %20 = dma.hbm_to_vmem [thread:$0]  %s0, 256, %s15, [#allocation3], 128, 128, 8
    $region5: #{tpu_custom_call.1} parent=1 // pred_fallthru
      _
    // Predicated region
    $region6: #{tpu_custom_call.1} parent=1 // pred_check
      _
    $region7: #{tpu_custom_call.1} parent=1 // pred_check_branch
      %22 = sbr.rel (0) target = $region9
    $region8: #{tpu_custom_call.1} parent=1 // pred_region
      %s24 = ssub.s32 1152, 1152
      %25 = vsyncadd [#allocation5], %s24
      %s26 = sshll.u32 [#allocation4], 4
      %s27 = int_to_ptr.vmem [resolvable:$true] %s26
      %32 = dma.hbm_to_vmem [thread:$0]  %s1, 1152, %s27, [#allocation5], 128, 128, 8
    $region9: #{tpu_custom_call.1} parent=1 // pred_fallthru
      _
    // Predicated region
    $region10: #{tpu_custom_call.1} parent=1 // pred_check
      _
    $region11: #{tpu_custom_call.1} parent=1 // pred_check_branch
      %34 = sbr.rel (0) target = $region13
    $region12: #{tpu_custom_call.1} parent=1 // pred_region
      %35 = dma.done [#allocation3], 256
    $region13: #{tpu_custom_call.1} parent=1 // pred_fallthru
      _
    // Predicated region
    $region14: #{tpu_custom_call.1} parent=1 // pred_check
      _
    $region15: #{tpu_custom_call.1} parent=1 // pred_check_branch
      %37 = sbr.rel (0) target = $region17
    $region16: #{tpu_custom_call.1} parent=1 // pred_region
      %38 = dma.done [#allocation5], 1152
    $region17: #{tpu_custom_call.1} parent=1 // pred_fallthru
      _
    %v39 = vld [vmem:[#allocation2] sm:$0xff]
    %v40 = vld [vmem:[#allocation2 + $0x8] sm:$0xff]
    %v41 = vld [vmem:[#allocation4] sm:$0xff]
    %v42 = vld [vmem:[#allocation4 + $0x8] sm:$0xff]
    %v43 = vld [vmem:[#allocation4 + $0x10] sm:$0xff]
    %v44 = vld [vmem:[#allocation4 + $0x18] sm:$0xff]
    %v45 = vld [vmem:[#allocation4 + $0x20] sm:$0xff]
    %v46 = vld [vmem:[#allocation4 + $0x28] sm:$0xff]
    %v47 = vld [vmem:[#allocation4 + $0x30] sm:$0xff]
    %v48 = vld [vmem:[#allocation4 + $0x38] sm:$0xff]
    %v49 = vld [vmem:[#allocation4 + $0x40] sm:$0x1]
    %v50 = vld [vmem:[#allocation4 + $0x41] sm:$0x1]
    %v51 = vld [vmem:[#allocation4 + $0x42] sm:$0x1]
    %v52 = vld [vmem:[#allocation4 + $0x43] sm:$0x1]
    %v53 = vlaneseq
    %v54 = vshrl.u32 %v53, 7
    %v55 = vsub.s32 0, %v54
    %v56 = vrot.slane %v49, %v55
    %vm57 = vcmask 130048
    %v59 = vsel %vm57, %v39, 0
    %v62 = vsel %vm57, %v40, 0
    %64 = vmatprep.subr.mxu0 0.0
    %65 = vmatpush1.msra.mxu0 %v41
    %66 = vmatprep.subr.mxu0 0.0
    %67 = vmatpush1.msra.mxu0 %v42
    %68 = vmatprep.subr.mxu0 0.0
    %69 = vmatpush1.msra.mxu0 0.0
    %70 = vmatprep.subr.mxu0 0.0
    %71 = vmatpush1.msra.mxu0 0.0
    %72 = vmatprep.subr.mxu0 0.0
    %73 = vmatpush1.msra.mxu0 0.0
    %74 = vmatprep.subr.mxu0 0.0
    %75 = vmatpush1.msra.mxu0 0.0
    %76 = vmatprep.subr.mxu0 0.0
    %77 = vmatpush1.msra.mxu0 0.0
    %78 = vmatprep.subr.mxu0 0.0
    %79 = vmatpush1.msra.mxu0 0.0
    %80 = vmatprep.subr.mxu0 0.0
    %81 = vmatpush1.msra.mxu0 0.0
    %82 = vmatprep.subr.mxu0 0.0
    %83 = vmatpush1.msra.mxu0 0.0
    %84 = vmatprep.subr.mxu0 0.0
    %85 = vmatpush1.msra.mxu0 0.0
    %86 = vmatprep.subr.mxu0 0.0
    %87 = vmatpush1.msra.mxu0 0.0
    %88 = vmatprep.subr.mxu0 0.0
    %89 = vmatpush1.msra.mxu0 0.0
    %90 = vmatprep.subr.mxu0 0.0
    %91 = vmatpush1.msra.mxu0 0.0
    %92 = vmatprep.subr.mxu0 0.0
    %93 = vmatpush1.msra.mxu0 0.0
    %94 = vmatprep.subr.mxu0 0.0
    %95 = vmatpush1.msra.mxu0 0.0
    %96 = vmatprep.subr.mxu0 0.0
    %97 = vmatpush1.msra.mxu0 0.0
    %98 = vmatprep.subr.mxu0 0.0
    %99 = vmatpush1.msra.mxu0 0.0
    %100 = vmatprep.subr.mxu0 0.0
    %101 = vmatpush1.msra.mxu0 0.0
    %102 = vmatprep.subr.mxu0 0.0
    %103 = vmatpush1.msra.mxu0 0.0
    %104 = vmatprep.subr.mxu0 0.0
    %105 = vmatpush1.msra.mxu0 0.0
    %106 = vmatprep.subr.mxu0 0.0
    %107 = vmatpush1.msra.mxu0 0.0
    %108 = vmatprep.subr.mxu0 0.0
    %109 = vmatpush1.msra.mxu0 0.0
    %110 = vmatprep.subr.mxu0 0.0
    %111 = vmatpush1.msra.mxu0 0.0
    %112 = vmatprep.subr.mxu0 0.0
    %113 = vmatpush1.msra.mxu0 0.0
    %114 = vmatprep.subr.mxu0 0.0
    %115 = vmatpush1.msra.mxu0 0.0
    %116 = vmatprep.subr.mxu0 0.0
    %117 = vmatpush1.msra.mxu0 0.0
    %118 = vmatprep.subr.mxu0 0.0
    %119 = vmatpush1.msra.mxu0 0.0
    %120 = vmatprep.subr.mxu0 0.0
    %121 = vmatpush1.msra.mxu0 0.0
    %122 = vmatprep.subr.mxu0 0.0
    %123 = vmatpush1.msra.mxu0 0.0
    %124 = vmatprep.subr.mxu0 0.0
    %125 = vmatpush1.msra.mxu0 0.0
    %126 = vmatprep.subr.mxu0 0.0
    %127 = vmatpush1.msra.mxu0 0.0
    %128 = vmatprep.mubr.f32.mxu0 0.0
    %129 = vmatmul.mubr.f32.gmra.mrb[0].mxu0 %v59
    %v130 = vpop.f32.mrb[0].mxu0
    %v131 = vadd.f32 %v56, %v130
    %v132 = vpop.f32.mrb[0].mxu0
    %133 = vmatprep.mubr.f32.mxu0 0.0
    %134 = vmatmul.mubr.f32.gmra.mrb[0].mxu0 %v62
    %v135 = vpop.f32.mrb[0].mxu0
    %v136 = vadd.f32 %v56, %v135
    %v137 = vpop.f32.mrb[0].mxu0
    %138 = vdwg.mxu0
    %v139 = vmax.f32 %v131, 0.0
    %v140 = vmax.f32 %v136, 0.0
    %v141 = vlaneseq
    %v142 = vshrl.u32 %v141, 7
    %v143 = vsub.s32 0, %v142
    %v144 = vrot.slane %v50, %v143
    %vm145 = vcmask 64512
    %v147 = vsel %vm145, %v139, 0
    %v150 = vsel %vm145, %v140, 0
    %152 = vmatprep.subr.mxu0 0.0
    %153 = vmatpush1.msra.mxu0 %v47
    %154 = vmatprep.subr.mxu0 0.0
    %155 = vmatpush1.msra.mxu0 0.0
    %156 = vmatprep.subr.mxu0 0.0
    %157 = vmatpush1.msra.mxu0 0.0
    %158 = vmatprep.subr.mxu0 0.0
    %159 = vmatpush1.msra.mxu0 0.0
    %160 = vmatprep.subr.mxu0 0.0
    %161 = vmatpush1.msra.mxu0 0.0
    %162 = vmatprep.subr.mxu0 0.0
    %163 = vmatpush1.msra.mxu0 0.0
    %164 = vmatprep.subr.mxu0 0.0
    %165 = vmatpush1.msra.mxu0 0.0
    %166 = vmatprep.subr.mxu0 0.0
    %167 = vmatpush1.msra.mxu0 0.0
    %168 = vmatprep.subr.mxu0 0.0
    %169 = vmatpush1.msra.mxu0 0.0
    %170 = vmatprep.subr.mxu0 0.0
    %171 = vmatpush1.msra.mxu0 0.0
    %172 = vmatprep.subr.mxu0 0.0
    %173 = vmatpush1.msra.mxu0 0.0
    %174 = vmatprep.subr.mxu0 0.0
    %175 = vmatpush1.msra.mxu0 0.0
    %176 = vmatprep.subr.mxu0 0.0
    %177 = vmatpush1.msra.mxu0 0.0
    %178 = vmatprep.subr.mxu0 0.0
    %179 = vmatpush1.msra.mxu0 0.0
    %180 = vmatprep.subr.mxu0 0.0
    %181 = vmatpush1.msra.mxu0 0.0
    %182 = vmatprep.subr.mxu0 0.0
    %183 = vmatpush1.msra.mxu0 0.0
    %184 = vmatprep.subr.mxu0 0.0
    %185 = vmatpush1.msra.mxu0 0.0
    %186 = vmatprep.subr.mxu0 0.0
    %187 = vmatpush1.msra.mxu0 0.0
    %188 = vmatprep.subr.mxu0 0.0
    %189 = vmatpush1.msra.mxu0 0.0
    %190 = vmatprep.subr.mxu0 0.0
    %191 = vmatpush1.msra.mxu0 0.0
    %192 = vmatprep.subr.mxu0 0.0
    %193 = vmatpush1.msra.mxu0 0.0
    %194 = vmatprep.subr.mxu0 0.0
    %195 = vmatpush1.msra.mxu0 0.0
    %196 = vmatprep.subr.mxu0 0.0
    %197 = vmatpush1.msra.mxu0 0.0
    %198 = vmatprep.subr.mxu0 0.0
    %199 = vmatpush1.msra.mxu0 0.0
    %200 = vmatprep.subr.mxu0 0.0
    %201 = vmatpush1.msra.mxu0 0.0
    %202 = vmatprep.subr.mxu0 0.0
    %203 = vmatpush1.msra.mxu0 0.0
    %204 = vmatprep.subr.mxu0 0.0
    %205 = vmatpush1.msra.mxu0 0.0
    %206 = vmatprep.subr.mxu0 0.0
    %207 = vmatpush1.msra.mxu0 0.0
    %208 = vmatprep.subr.mxu0 0.0
    %209 = vmatpush1.msra.mxu0 0.0
    %210 = vmatprep.subr.mxu0 0.0
    %211 = vmatpush1.msra.mxu0 0.0
    %212 = vmatprep.subr.mxu0 0.0
    %213 = vmatpush1.msra.mxu0 0.0
    %214 = vmatprep.subr.mxu0 0.0
    %215 = vmatpush1.msra.mxu0 0.0
    %216 = vmatprep.mubr.f32.mxu0 0.0
    %217 = vmatmul.mubr.f32.gmra.mrb[0].mxu0 %v147
    %v218 = vpop.f32.mrb[0].mxu0
    %v219 = vadd.f32 %v144, %v218
    %v220 = vpop.f32.mrb[0].mxu0
    %221 = vmatprep.mubr.f32.mxu0 0.0
    %222 = vmatmul.mubr.f32.gmra.mrb[0].mxu0 %v150
    %v223 = vpop.f32.mrb[0].mxu0
    %v224 = vadd.f32 %v144, %v223
    %v225 = vpop.f32.mrb[0].mxu0
    %226 = vdwg.mxu0
    %v227 = vmul.f32 %v219, 1.5707964
    %v228 = vmul.f32 %v224, 1.5707964
    %v229 = vmul.f32 %v227, 0.5
    %v230 = vmul.f32 %v228, 0.5
    %v231 = vadd.f32 %v229, 0.7853982
    %v232 = vadd.f32 %v230, 0.7853982
    %v233 = vand.u32 2147483647, %v231
    %vm234 = vcmp.le.f32.partialorder %v233, 0.7853982
    %vm235 = vcmp.lt.s32.totalorder %v231, 0
    %v236 = vand.u32 %v231, 2139095040
    %v237 = vshrl.u32 %v236, 23
    %v238 = vsub.s32 %v237, 127
    %v239 = vand.u32 2147483647, %v231
    %v240 = vand.u32 %v239, 8388607
    %v241 = vor.u32 %v240, 8388608
    %v242 = vsub.s32 0, %v241
    %v243 = vadd.s32 %v238, 1
    %vm244 = vcmp.gt.s32.totalorder %v243, 0
    %v245 = vsel %vm244, %v243, 0
    %v246 = vshrl.u32 %v245, 5
    %v247 = vand.u32 %v245, 31
    %v248 = vsub.s32 32, %v247
    %v249 = vshrl.u32 683565275, %v248
    %v250 = vshll.u32 683565275, %v247
    %v251 = vshrl.u32 2475754826, %v248
    %v252 = vor.u32 %v250, %v251
    %v253 = vshll.u32 2475754826, %v247
    %v254 = vshrl.u32 2131351028, %v248
    %v255 = vor.u32 %v253, %v254
    %v256 = vshll.u32 2131351028, %v247
    %v257 = vshrl.u32 2102212464, %v248
    %v258 = vor.u32 %v256, %v257
    %v259 = vshll.u32 2102212464, %v247
    %v260 = vshrl.u32 920167782, %v248
    %v261 = vor.u32 %v259, %v260
    %v262 = vshll.u32 920167782, %v247
    %v263 = vshrl.u32 1326507024, %v248
    %v264 = vor.u32 %v262, %v263
    %vm265 = vcmp.lt.s32.totalorder %v246, 1
    %vm266 = vcmp.lt.s32.totalorder %v246, 2
    %vm267 = vcmp.lt.s32.totalorder %v246, 3
    %vm268 = vcmp.lt.s32.totalorder %v246, 4
    %v269 = vsel %vm265, %v249, %v252
    %v270 = vsel %vm268, %v258, 2102212464
    %v271 = vsel %vm267, %v255, %v270
    %v272 = vsel %vm266, %v269, %v271
    %v273 = vsel %vm265, %v252, %v255
    %v274 = vsel %vm268, %v261, 920167782
    %v275 = vsel %vm267, %v258, %v274
    %v276 = vsel %vm266, %v273, %v275
    %v277 = vsel %vm265, %v255, %v258
    %v278 = vsel %vm268, %v264, 1326507024
    %v279 = vsel %vm267, %v261, %v278
    %v280 = vsel %vm266, %v277, %v279
    %v281 = vshll.u32 %v241, 8
    %v282 = vmul.u32.u64.compose %v281, %v280
    %v283 = vextract.low.u32 %v282
    %v284 = vextract.high.u32 %v282
    %v285 = vmul.u32.u64.compose %v281, %v276
    %v286 = vextract.low.u32 %v285
    %v287 = vextract.high.u32 %v285
    %v288 = vmul.u32 %v281, %v272
    %v289 = vadd.s32 %v284, %v286
    %vm290 = vc.u32 %v284, %v286
    %v291 = vadd.s32 %v287, 1
    %v292 = vsel %vm290, %v291, %v287
    %v293 = vadd.s32 %v288, %v292
    %v294 = vadd.s32 %v293, 536870912
    %v295 = vshrl.u32 %v294, 30
    %v296 = vshll.u32 %v295, 30
    %v297 = vsub.s32 %v293, %v296
    %vm298 = vcmp.lt.s32.totalorder %v297, 0
    %v299 = vsub.s32 0, %v297
    %v300 = vsel %vm298, %v299, %v297
    %v301 = vclz %v300
    %v302 = vsub.s32 %v301, 2
    %vm303 = vcmp.gt.s32.totalorder 0, %v302
    %v304 = vsel %vm303, 0, %v302
    %v305 = vsub.s32 32, %v304
    %v306 = vshll.u32 %v297, %v304
    %v307 = vshrl.u32 %v289, %v305
    %v308 = vor.u32 %v306, %v307
    %v309 = vsub.s32 4294967266, %v304
    %v310 = vadd.s32 %v309, 127
    %v311 = vshll.u32 %v310, 23
    %v312 = vor.u32 4788187, %v311
    %v313 = vand.u32 2147483647, %v312
    %v315 = vcvt.s32.f32 %v308
    %v316 = vmul.f32 %v315, %v313
    %v317 = vxor.u32 %v316, 2147483648
    %v318 = vsel %vm235, %v317, %v316
    %v319 = vsub.s32 4, %v295
    %v320 = vsel %vm235, %v319, %v295
    %v321 = vsel %vm234, %v231, %v318
    %v322 = vsel %vm234, 0, %v320
    %v323 = vcosq.f32.pop %v321
    %v324 = vsinq.f32.pop %v321
    %vm325 = vweird.f32 %v231
    %v326 = vand.u32 %v322, 3
    %vm327 = vcmp.lt.s32.totalorder %v326, 2
    %vm328 = vcmp.eq.s32.totalorder %v326, 0
    %v329 = vxor.u32 %v324, 2147483648
    %v330 = vsel %vm328, %v323, %v329
    %vm331 = vcmp.eq.s32.totalorder %v326, 2
    %v332 = vxor.u32 %v323, 2147483648
    %v333 = vsel %vm331, %v332, %v324
    %v334 = vsel %vm327, %v330, %v333
    %v335 = vsel %vm325, nan, %v334
    %v336 = vand.u32 2147483647, %v232
    %vm337 = vcmp.le.f32.partialorder %v336, 0.7853982
    %vm338 = vcmp.lt.s32.totalorder %v232, 0
    %v339 = vand.u32 %v232, 2139095040
    %v340 = vshrl.u32 %v339, 23
    %v341 = vsub.s32 %v340, 127
    %v342 = vand.u32 2147483647, %v232
    %v343 = vand.u32 %v342, 8388607
    %v344 = vor.u32 %v343, 8388608
    %v345 = vsub.s32 0, %v344
    %v346 = vadd.s32 %v341, 1
    %vm347 = vcmp.gt.s32.totalorder %v346, 0
    %v348 = vsel %vm347, %v346, 0
    %v349 = vshrl.u32 %v348, 5
    %v350 = vand.u32 %v348, 31
    %v351 = vsub.s32 32, %v350
    %v352 = vshrl.u32 683565275, %v351
    %v353 = vshll.u32 683565275, %v350
    %v354 = vshrl.u32 2475754826, %v351
    %v355 = vor.u32 %v353, %v354
    %v356 = vshll.u32 2475754826, %v350
    %v357 = vshrl.u32 2131351028, %v351
    %v358 = vor.u32 %v356, %v357
    %v359 = vshll.u32 2131351028, %v350
    %v360 = vshrl.u32 2102212464, %v351
    %v361 = vor.u32 %v359, %v360
    %v362 = vshll.u32 2102212464, %v350
    %v363 = vshrl.u32 920167782, %v351
    %v364 = vor.u32 %v362, %v363
    %v365 = vshll.u32 920167782, %v350
    %v366 = vshrl.u32 1326507024, %v351
    %v367 = vor.u32 %v365, %v366
    %vm368 = vcmp.lt.s32.totalorder %v349, 1
    %vm369 = vcmp.lt.s32.totalorder %v349, 2
    %vm370 = vcmp.lt.s32.totalorder %v349, 3
    %vm371 = vcmp.lt.s32.totalorder %v349, 4
    %v372 = vsel %vm368, %v352, %v355
    %v373 = vsel %vm371, %v361, 2102212464
    %v374 = vsel %vm370, %v358, %v373
    %v375 = vsel %vm369, %v372, %v374
    %v376 = vsel %vm368, %v355, %v358
    %v377 = vsel %vm371, %v364, 920167782
    %v378 = vsel %vm370, %v361, %v377
    %v379 = vsel %vm369, %v376, %v378
    %v380 = vsel %vm368, %v358, %v361
    %v381 = vsel %vm371, %v367, 1326507024
    %v382 = vsel %vm370, %v364, %v381
    %v383 = vsel %vm369, %v380, %v382
    %v384 = vshll.u32 %v344, 8
    %v385 = vmul.u32.u64.compose %v384, %v383
    %v386 = vextract.low.u32 %v385
    %v387 = vextract.high.u32 %v385
    %v388 = vmul.u32.u64.compose %v384, %v379
    %v389 = vextract.low.u32 %v388
    %v390 = vextract.high.u32 %v388
    %v391 = vmul.u32 %v384, %v375
    %v392 = vadd.s32 %v387, %v389
    %vm393 = vc.u32 %v387, %v389
    %v394 = vadd.s32 %v390, 1
    %v395 = vsel %vm393, %v394, %v390
    %v396 = vadd.s32 %v391, %v395
    %v397 = vadd.s32 %v396, 536870912
    %v398 = vshrl.u32 %v397, 30
    %v399 = vshll.u32 %v398, 30
    %v400 = vsub.s32 %v396, %v399
    %vm401 = vcmp.lt.s32.totalorder %v400, 0
    %v402 = vsub.s32 0, %v400
    %v403 = vsel %vm401, %v402, %v400
    %v404 = vclz %v403
    %v405 = vsub.s32 %v404, 2
    %vm406 = vcmp.gt.s32.totalorder 0, %v405
    %v407 = vsel %vm406, 0, %v405
    %v408 = vsub.s32 32, %v407
    %v409 = vshll.u32 %v400, %v407
    %v410 = vshrl.u32 %v392, %v408
    %v411 = vor.u32 %v409, %v410
    %v412 = vsub.s32 4294967266, %v407
    %v413 = vadd.s32 %v412, 127
    %v414 = vshll.u32 %v413, 23
    %v415 = vor.u32 4788187, %v414
    %v416 = vand.u32 2147483647, %v415
    %v418 = vcvt.s32.f32 %v411
    %v419 = vmul.f32 %v418, %v416
    %v420 = vxor.u32 %v419, 2147483648
    %v421 = vsel %vm338, %v420, %v419
    %v422 = vsub.s32 4, %v398
    %v423 = vsel %vm338, %v422, %v398
    %v424 = vsel %vm337, %v232, %v421
    %v425 = vsel %vm337, 0, %v423
    %v426 = vcosq.f32.pop %v424
    %v427 = vsinq.f32.pop %v424
    %vm428 = vweird.f32 %v232
    %v429 = vand.u32 %v425, 3
    %vm430 = vcmp.lt.s32.totalorder %v429, 2
    %vm431 = vcmp.eq.s32.totalorder %v429, 0
    %v432 = vxor.u32 %v427, 2147483648
    %v433 = vsel %vm431, %v426, %v432
    %vm434 = vcmp.eq.s32.totalorder %v429, 2
    %v435 = vxor.u32 %v426, 2147483648
    %v436 = vsel %vm434, %v435, %v427
    %v437 = vsel %vm430, %v433, %v436
    %v438 = vsel %vm428, nan, %v437
    %v439 = vand.u32 2147483647, %v231
    %vm440 = vcmp.le.f32.partialorder %v439, 0.7853982
    %vm441 = vcmp.lt.s32.totalorder %v231, 0
    %v442 = vand.u32 %v231, 2139095040
    %v443 = vshrl.u32 %v442, 23
    %v444 = vsub.s32 %v443, 127
    %v445 = vand.u32 2147483647, %v231
    %v446 = vand.u32 %v445, 8388607
    %v447 = vor.u32 %v446, 8388608
    %v448 = vsub.s32 0, %v447
    %v449 = vadd.s32 %v444, 1
    %vm450 = vcmp.gt.s32.totalorder %v449, 0
    %v451 = vsel %vm450, %v449, 0
    %v452 = vshrl.u32 %v451, 5
    %v453 = vand.u32 %v451, 31
    %v454 = vsub.s32 32, %v453
    %v455 = vshrl.u32 683565275, %v454
    %v456 = vshll.u32 683565275, %v453
    %v457 = vshrl.u32 2475754826, %v454
    %v458 = vor.u32 %v456, %v457
    %v459 = vshll.u32 2475754826, %v453
    %v460 = vshrl.u32 2131351028, %v454
    %v461 = vor.u32 %v459, %v460
    %v462 = vshll.u32 2131351028, %v453
    %v463 = vshrl.u32 2102212464, %v454
    %v464 = vor.u32 %v462, %v463
    %v465 = vshll.u32 2102212464, %v453
    %v466 = vshrl.u32 920167782, %v454
    %v467 = vor.u32 %v465, %v466
    %v468 = vshll.u32 920167782, %v453
    %v469 = vshrl.u32 1326507024, %v454
    %v470 = vor.u32 %v468, %v469
    %vm471 = vcmp.lt.s32.totalorder %v452, 1
    %vm472 = vcmp.lt.s32.totalorder %v452, 2
    %vm473 = vcmp.lt.s32.totalorder %v452, 3
    %vm474 = vcmp.lt.s32.totalorder %v452, 4
    %v475 = vsel %vm471, %v455, %v458
    %v476 = vsel %vm474, %v464, 2102212464
    %v477 = vsel %vm473, %v461, %v476
    %v478 = vsel %vm472, %v475, %v477
    %v479 = vsel %vm471, %v458, %v461
    %v480 = vsel %vm474, %v467, 920167782
    %v481 = vsel %vm473, %v464, %v480
    %v482 = vsel %vm472, %v479, %v481
    %v483 = vsel %vm471, %v461, %v464
    %v484 = vsel %vm474, %v470, 1326507024
    %v485 = vsel %vm473, %v467, %v484
    %v486 = vsel %vm472, %v483, %v485
    %v487 = vshll.u32 %v447, 8
    %v488 = vmul.u32.u64.compose %v487, %v486
    %v489 = vextract.low.u32 %v488
    %v490 = vextract.high.u32 %v488
    %v491 = vmul.u32.u64.compose %v487, %v482
    %v492 = vextract.low.u32 %v491
    %v493 = vextract.high.u32 %v491
    %v494 = vmul.u32 %v487, %v478
    %v495 = vadd.s32 %v490, %v492
    %vm496 = vc.u32 %v490, %v492
    %v497 = vadd.s32 %v493, 1
    %v498 = vsel %vm496, %v497, %v493
    %v499 = vadd.s32 %v494, %v498
    %v500 = vadd.s32 %v499, 536870912
    %v501 = vshrl.u32 %v500, 30
    %v502 = vshll.u32 %v501, 30
    %v503 = vsub.s32 %v499, %v502
    %vm504 = vcmp.lt.s32.totalorder %v503, 0
    %v505 = vsub.s32 0, %v503
    %v506 = vsel %vm504, %v505, %v503
    %v507 = vclz %v506
    %v508 = vsub.s32 %v507, 2
    %vm509 = vcmp.gt.s32.totalorder 0, %v508
    %v510 = vsel %vm509, 0, %v508
    %v511 = vsub.s32 32, %v510
    %v512 = vshll.u32 %v503, %v510
    %v513 = vshrl.u32 %v495, %v511
    %v514 = vor.u32 %v512, %v513
    %v515 = vsub.s32 4294967266, %v510
    %v516 = vadd.s32 %v515, 127
    %v517 = vshll.u32 %v516, 23
    %v518 = vor.u32 4788187, %v517
    %v519 = vand.u32 2147483647, %v518
    %v521 = vcvt.s32.f32 %v514
    %v522 = vmul.f32 %v521, %v519
    %v523 = vxor.u32 %v522, 2147483648
    %v524 = vsel %vm441, %v523, %v522
    %v525 = vsub.s32 4, %v501
    %v526 = vsel %vm441, %v525, %v501
    %v527 = vsel %vm440, %v231, %v524
    %v528 = vsel %vm440, 0, %v526
    %v529 = vcosq.f32.pop %v527
    %v530 = vsinq.f32.pop %v527
    %vm531 = vweird.f32 %v231
    %v532 = vadd.s32 %v528, 3
    %v533 = vand.u32 %v532, 3
    %vm534 = vcmp.lt.s32.totalorder %v533, 2
    %vm535 = vcmp.eq.s32.totalorder %v533, 0
    %v536 = vxor.u32 %v530, 2147483648
    %v537 = vsel %vm535, %v529, %v536
    %vm538 = vcmp.eq.s32.totalorder %v533, 2
    %v539 = vxor.u32 %v529, 2147483648
    %v540 = vsel %vm538, %v539, %v530
    %v541 = vsel %vm534, %v537, %v540
    %v542 = vsel %vm531, nan, %v541
    %v543 = vand.u32 2147483647, %v232
    %vm544 = vcmp.le.f32.partialorder %v543, 0.7853982
    %vm545 = vcmp.lt.s32.totalorder %v232, 0
    %v546 = vand.u32 %v232, 2139095040
    %v547 = vshrl.u32 %v546, 23
    %v548 = vsub.s32 %v547, 127
    %v549 = vand.u32 2147483647, %v232
    %v550 = vand.u32 %v549, 8388607
    %v551 = vor.u32 %v550, 8388608
    %v552 = vsub.s32 0, %v551
    %v553 = vadd.s32 %v548, 1
    %vm554 = vcmp.gt.s32.totalorder %v553, 0
    %v555 = vsel %vm554, %v553, 0
    %v556 = vshrl.u32 %v555, 5
    %v557 = vand.u32 %v555, 31
    %v558 = vsub.s32 32, %v557
    %v559 = vshrl.u32 683565275, %v558
    %v560 = vshll.u32 683565275, %v557
    %v561 = vshrl.u32 2475754826, %v558
    %v562 = vor.u32 %v560, %v561
    %v563 = vshll.u32 2475754826, %v557
    %v564 = vshrl.u32 2131351028, %v558
    %v565 = vor.u32 %v563, %v564
    %v566 = vshll.u32 2131351028, %v557
    %v567 = vshrl.u32 2102212464, %v558
    %v568 = vor.u32 %v566, %v567
    %v569 = vshll.u32 2102212464, %v557
    %v570 = vshrl.u32 920167782, %v558
    %v571 = vor.u32 %v569, %v570
    %v572 = vshll.u32 920167782, %v557
    %v573 = vshrl.u32 1326507024, %v558
    %v574 = vor.u32 %v572, %v573
    %vm575 = vcmp.lt.s32.totalorder %v556, 1
    %vm576 = vcmp.lt.s32.totalorder %v556, 2
    %vm577 = vcmp.lt.s32.totalorder %v556, 3
    %vm578 = vcmp.lt.s32.totalorder %v556, 4
    %v579 = vsel %vm575, %v559, %v562
    %v580 = vsel %vm578, %v568, 2102212464
    %v581 = vsel %vm577, %v565, %v580
    %v582 = vsel %vm576, %v579, %v581
    %v583 = vsel %vm575, %v562, %v565
    %v584 = vsel %vm578, %v571, 920167782
    %v585 = vsel %vm577, %v568, %v584
    %v586 = vsel %vm576, %v583, %v585
    %v587 = vsel %vm575, %v565, %v568
    %v588 = vsel %vm578, %v574, 1326507024
    %v589 = vsel %vm577, %v571, %v588
    %v590 = vsel %vm576, %v587, %v589
    %v591 = vshll.u32 %v551, 8
    %v592 = vmul.u32.u64.compose %v591, %v590
    %v593 = vextract.low.u32 %v592
    %v594 = vextract.high.u32 %v592
    %v595 = vmul.u32.u64.compose %v591, %v586
    %v596 = vextract.low.u32 %v595
    %v597 = vextract.high.u32 %v595
    %v598 = vmul.u32 %v591, %v582
    %v599 = vadd.s32 %v594, %v596
    %vm600 = vc.u32 %v594, %v596
    %v601 = vadd.s32 %v597, 1
    %v602 = vsel %vm600, %v601, %v597
    %v603 = vadd.s32 %v598, %v602
    %v604 = vadd.s32 %v603, 536870912
    %v605 = vshrl.u32 %v604, 30
    %v606 = vshll.u32 %v605, 30
    %v607 = vsub.s32 %v603, %v606
    %vm608 = vcmp.lt.s32.totalorder %v607, 0
    %v609 = vsub.s32 0, %v607
    %v610 = vsel %vm608, %v609, %v607
    %v611 = vclz %v610
    %v612 = vsub.s32 %v611, 2
    %vm613 = vcmp.gt.s32.totalorder 0, %v612
    %v614 = vsel %vm613, 0, %v612
    %v615 = vsub.s32 32, %v614
    %v616 = vshll.u32 %v607, %v614
    %v617 = vshrl.u32 %v599, %v615
    %v618 = vor.u32 %v616, %v617
    %v619 = vsub.s32 4294967266, %v614
    %v620 = vadd.s32 %v619, 127
    %v621 = vshll.u32 %v620, 23
    %v622 = vor.u32 4788187, %v621
    %v623 = vand.u32 2147483647, %v622
    %v625 = vcvt.s32.f32 %v618
    %v626 = vmul.f32 %v625, %v623
    %v627 = vxor.u32 %v626, 2147483648
    %v628 = vsel %vm545, %v627, %v626
    %v629 = vsub.s32 4, %v605
    %v630 = vsel %vm545, %v629, %v605
    %v631 = vsel %vm544, %v232, %v628
    %v632 = vsel %vm544, 0, %v630
    %v633 = vcosq.f32.pop %v631
    %v634 = vsinq.f32.pop %v631
    %vm635 = vweird.f32 %v232
    %v636 = vadd.s32 %v632, 3
    %v637 = vand.u32 %v636, 3
    %vm638 = vcmp.lt.s32.totalorder %v637, 2
    %vm639 = vcmp.eq.s32.totalorder %v637, 0
    %v640 = vxor.u32 %v634, 2147483648
    %v641 = vsel %vm639, %v633, %v640
    %vm642 = vcmp.eq.s32.totalorder %v637, 2
    %v643 = vxor.u32 %v633, 2147483648
    %v644 = vsel %vm642, %v643, %v634
    %v645 = vsel %vm638, %v641, %v644
    %v646 = vsel %vm635, nan, %v645
    %v647 = vsub.f32 %v542, %v335
    %v648 = vsub.f32 %v646, %v438
    %v649 = vlaneseq
    %v650 = vand.u32 %v649, 127
    %v651 = vshra.s32 %v650, 3
    %v652 = vand.u32 %v651, 1
    %v653 = vcvt.s32.f32 %v652
    %655 = vset.pattern.permute.xlu0 0
    %656 = vperm.xlu0 %655, %v647
    %v657 = vpop.permute.xlu0 %656
    %660 = vset.pattern.permute.xlu0 0
    %661 = vperm.xlu0 %660, %v648
    %v662 = vpop.permute.xlu0 %661
    %v664 = vmul.f32 %v657, %v653
    %v665 = vmul.f32 %v662, %v653
    %667 = vset.pattern.permute.xlu0 0
    %668 = vperm.xlu0 %667, %v335
    %v669 = vpop.permute.xlu0 %668
    %672 = vset.pattern.permute.xlu0 0
    %673 = vperm.xlu0 %672, %v438
    %v674 = vpop.permute.xlu0 %673
    %v676 = vadd.f32 %v669, %v664
    %v677 = vadd.f32 %v674, %v665
    %v678 = vshra.s32 %v650, 2
    %v679 = vand.u32 %v678, 1
    %v680 = vcvt.s32.f32 %v679
    %681 = vset.pattern.permute.xlu0 1
    %682 = vperm.xlu0 %681, %v647
    %v683 = vpop.permute.xlu0 %682
    %685 = vset.pattern.permute.xlu0 1
    %686 = vperm.xlu0 %685, %v648
    %v687 = vpop.permute.xlu0 %686
    %v689 = vmul.f32 %v683, %v680
    %v690 = vmul.f32 %v687, %v680
    %691 = vset.pattern.permute.xlu0 1
    %692 = vperm.xlu0 %691, %v335
    %v693 = vpop.permute.xlu0 %692
    %695 = vset.pattern.permute.xlu0 1
    %696 = vperm.xlu0 %695, %v438
    %v697 = vpop.permute.xlu0 %696
    %v699 = vadd.f32 %v693, %v689
    %v700 = vadd.f32 %v697, %v690
    %v701 = vmul.f32 %v676, %v699
    %v702 = vmul.f32 %v677, %v700
    %v703 = vshra.s32 %v650, 1
    %v704 = vand.u32 %v703, 1
    %v705 = vcvt.s32.f32 %v704
    %706 = vset.pattern.permute.xlu0 2
    %707 = vperm.xlu0 %706, %v647
    %v708 = vpop.permute.xlu0 %707
    %710 = vset.pattern.permute.xlu0 2
    %711 = vperm.xlu0 %710, %v648
    %v712 = vpop.permute.xlu0 %711
    %v714 = vmul.f32 %v708, %v705
    %v715 = vmul.f32 %v712, %v705
    %716 = vset.pattern.permute.xlu0 2
    %717 = vperm.xlu0 %716, %v335
    %v718 = vpop.permute.xlu0 %717
    %720 = vset.pattern.permute.xlu0 2
    %721 = vperm.xlu0 %720, %v438
    %v722 = vpop.permute.xlu0 %721
    %v724 = vadd.f32 %v718, %v714
    %v725 = vadd.f32 %v722, %v715
    %v726 = vmul.f32 %v701, %v724
    %v727 = vmul.f32 %v702, %v725
    %v728 = vand.u32 %v650, 1
    %v729 = vcvt.s32.f32 %v728
    %730 = vset.pattern.permute.xlu0 3
    %731 = vperm.xlu0 %730, %v647
    %v732 = vpop.permute.xlu0 %731
    %734 = vset.pattern.permute.xlu0 3
    %735 = vperm.xlu0 %734, %v648
    %v736 = vpop.permute.xlu0 %735
    %v738 = vmul.f32 %v732, %v729
    %v739 = vmul.f32 %v736, %v729
    %740 = vset.pattern.permute.xlu0 3
    %741 = vperm.xlu0 %740, %v335
    %v742 = vpop.permute.xlu0 %741
    %744 = vset.pattern.permute.xlu0 3
    %745 = vperm.xlu0 %744, %v438
    %v746 = vpop.permute.xlu0 %745
    %v748 = vadd.f32 %v742, %v738
    %v749 = vadd.f32 %v746, %v739
    %v750 = vmul.f32 %v726, %v748
    %v751 = vmul.f32 %v727, %v749
    %v753 = vsel %vm57, %v750, 0
    %v756 = vsel %vm57, %v751, 0
    %758 = vmatprep.subr.mxu0 0.0
    %759 = vmatpush1.msra.mxu0 %v43
    %760 = vmatprep.subr.mxu0 0.0
    %761 = vmatpush1.msra.mxu0 %v44
    %762 = vmatprep.subr.mxu0 0.0
    %763 = vmatpush1.msra.mxu0 0.0
    %764 = vmatprep.subr.mxu0 0.0
    %765 = vmatpush1.msra.mxu0 0.0
    %766 = vmatprep.subr.mxu0 0.0
    %767 = vmatpush1.msra.mxu0 0.0
    %768 = vmatprep.subr.mxu0 0.0
    %769 = vmatpush1.msra.mxu0 0.0
    %770 = vmatprep.subr.mxu0 0.0
    %771 = vmatpush1.msra.mxu0 0.0
    %772 = vmatprep.subr.mxu0 0.0
    %773 = vmatpush1.msra.mxu0 0.0
    %774 = vmatprep.subr.mxu0 0.0
    %775 = vmatpush1.msra.mxu0 0.0
    %776 = vmatprep.subr.mxu0 0.0
    %777 = vmatpush1.msra.mxu0 0.0
    %778 = vmatprep.subr.mxu0 0.0
    %779 = vmatpush1.msra.mxu0 0.0
    %780 = vmatprep.subr.mxu0 0.0
    %781 = vmatpush1.msra.mxu0 0.0
    %782 = vmatprep.subr.mxu0 0.0
    %783 = vmatpush1.msra.mxu0 0.0
    %784 = vmatprep.subr.mxu0 0.0
    %785 = vmatpush1.msra.mxu0 0.0
    %786 = vmatprep.subr.mxu0 0.0
    %787 = vmatpush1.msra.mxu0 0.0
    %788 = vmatprep.subr.mxu0 0.0
    %789 = vmatpush1.msra.mxu0 0.0
    %790 = vmatprep.subr.mxu0 0.0
    %791 = vmatpush1.msra.mxu0 0.0
    %792 = vmatprep.subr.mxu0 0.0
    %793 = vmatpush1.msra.mxu0 0.0
    %794 = vmatprep.subr.mxu0 0.0
    %795 = vmatpush1.msra.mxu0 0.0
    %796 = vmatprep.subr.mxu0 0.0
    %797 = vmatpush1.msra.mxu0 0.0
    %798 = vmatprep.subr.mxu0 0.0
    %799 = vmatpush1.msra.mxu0 0.0
    %800 = vmatprep.subr.mxu0 0.0
    %801 = vmatpush1.msra.mxu0 0.0
    %802 = vmatprep.subr.mxu0 0.0
    %803 = vmatpush1.msra.mxu0 0.0
    %804 = vmatprep.subr.mxu0 0.0
    %805 = vmatpush1.msra.mxu0 0.0
    %806 = vmatprep.subr.mxu0 0.0
    %807 = vmatpush1.msra.mxu0 0.0
    %808 = vmatprep.subr.mxu0 0.0
    %809 = vmatpush1.msra.mxu0 0.0
    %810 = vmatprep.subr.mxu0 0.0
    %811 = vmatpush1.msra.mxu0 0.0
    %812 = vmatprep.subr.mxu0 0.0
    %813 = vmatpush1.msra.mxu0 0.0
    %814 = vmatprep.subr.mxu0 0.0
    %815 = vmatpush1.msra.mxu0 0.0
    %816 = vmatprep.subr.mxu0 0.0
    %817 = vmatpush1.msra.mxu0 0.0
    %818 = vmatprep.subr.mxu0 0.0
    %819 = vmatpush1.msra.mxu0 0.0
    %820 = vmatprep.subr.mxu0 0.0
    %821 = vmatpush1.msra.mxu0 0.0
    %822 = vmatprep.mubr.f32.mxu0 0.0
    %823 = vmatmul.mubr.f32.gmra.mrb[0].mxu0 %v753
    %v824 = vpop.f32.mrb[0].mxu0
    %v825 = vadd.f32 0.0, %v824
    %v826 = vpop.f32.mrb[0].mxu0
    %827 = vmatprep.mubr.f32.mxu0 0.0
    %828 = vmatmul.mubr.f32.gmra.mrb[0].mxu0 %v756
    %v829 = vpop.f32.mrb[0].mxu0
    %v830 = vadd.f32 0.0, %v829
    %v831 = vpop.f32.mrb[0].mxu0
    %832 = vdwg.mxu0
    %v833 = vmul.f32 %v825, %v825
    %v834 = vmul.f32 %v830, %v830
    %v835 = vlaneseq
    %v836 = vshrl.u32 %v835, 7
    %v837 = vsub.s32 0, %v836
    %v838 = vrot.slane %v51, %v837
    %v840 = vsel %vm57, %v833, 0
    %v843 = vsel %vm57, %v834, 0
    %845 = vmatprep.subr.mxu0 0.0
    %846 = vmatpush1.msra.mxu0 %v45
    %847 = vmatprep.subr.mxu0 0.0
    %848 = vmatpush1.msra.mxu0 %v46
    %849 = vmatprep.subr.mxu0 0.0
    %850 = vmatpush1.msra.mxu0 0.0
    %851 = vmatprep.subr.mxu0 0.0
    %852 = vmatpush1.msra.mxu0 0.0
    %853 = vmatprep.subr.mxu0 0.0
    %854 = vmatpush1.msra.mxu0 0.0
    %855 = vmatprep.subr.mxu0 0.0
    %856 = vmatpush1.msra.mxu0 0.0
    %857 = vmatprep.subr.mxu0 0.0
    %858 = vmatpush1.msra.mxu0 0.0
    %859 = vmatprep.subr.mxu0 0.0
    %860 = vmatpush1.msra.mxu0 0.0
    %861 = vmatprep.subr.mxu0 0.0
    %862 = vmatpush1.msra.mxu0 0.0
    %863 = vmatprep.subr.mxu0 0.0
    %864 = vmatpush1.msra.mxu0 0.0
    %865 = vmatprep.subr.mxu0 0.0
    %866 = vmatpush1.msra.mxu0 0.0
    %867 = vmatprep.subr.mxu0 0.0
    %868 = vmatpush1.msra.mxu0 0.0
    %869 = vmatprep.subr.mxu0 0.0
    %870 = vmatpush1.msra.mxu0 0.0
    %871 = vmatprep.subr.mxu0 0.0
    %872 = vmatpush1.msra.mxu0 0.0
    %873 = vmatprep.subr.mxu0 0.0
    %874 = vmatpush1.msra.mxu0 0.0
    %875 = vmatprep.subr.mxu0 0.0
    %876 = vmatpush1.msra.mxu0 0.0
    %877 = vmatprep.subr.mxu0 0.0
    %878 = vmatpush1.msra.mxu0 0.0
    %879 = vmatprep.subr.mxu0 0.0
    %880 = vmatpush1.msra.mxu0 0.0
    %881 = vmatprep.subr.mxu0 0.0
    %882 = vmatpush1.msra.mxu0 0.0
    %883 = vmatprep.subr.mxu0 0.0
    %884 = vmatpush1.msra.mxu0 0.0
    %885 = vmatprep.subr.mxu0 0.0
    %886 = vmatpush1.msra.mxu0 0.0
    %887 = vmatprep.subr.mxu0 0.0
    %888 = vmatpush1.msra.mxu0 0.0
    %889 = vmatprep.subr.mxu0 0.0
    %890 = vmatpush1.msra.mxu0 0.0
    %891 = vmatprep.subr.mxu0 0.0
    %892 = vmatpush1.msra.mxu0 0.0
    %893 = vmatprep.subr.mxu0 0.0
    %894 = vmatpush1.msra.mxu0 0.0
    %895 = vmatprep.subr.mxu0 0.0
    %896 = vmatpush1.msra.mxu0 0.0
    %897 = vmatprep.subr.mxu0 0.0
    %898 = vmatpush1.msra.mxu0 0.0
    %899 = vmatprep.subr.mxu0 0.0
    %900 = vmatpush1.msra.mxu0 0.0
    %901 = vmatprep.subr.mxu0 0.0
    %902 = vmatpush1.msra.mxu0 0.0
    %903 = vmatprep.subr.mxu0 0.0
    %904 = vmatpush1.msra.mxu0 0.0
    %905 = vmatprep.subr.mxu0 0.0
    %906 = vmatpush1.msra.mxu0 0.0
    %907 = vmatprep.subr.mxu0 0.0
    %908 = vmatpush1.msra.mxu0 0.0
    %909 = vmatprep.mubr.f32.mxu0 0.0
    %910 = vmatmul.mubr.f32.gmra.mrb[0].mxu0 %v840
    %v911 = vpop.f32.mrb[0].mxu0
    %v912 = vadd.f32 %v838, %v911
    %v913 = vpop.f32.mrb[0].mxu0
    %914 = vmatprep.mubr.f32.mxu0 0.0
    %915 = vmatmul.mubr.f32.gmra.mrb[0].mxu0 %v843
    %v916 = vpop.f32.mrb[0].mxu0
    %v917 = vadd.f32 %v838, %v916
    %v918 = vpop.f32.mrb[0].mxu0
    %919 = vdwg.mxu0
    %v920 = vmax.f32 %v912, 0.0
    %v921 = vmax.f32 %v917, 0.0
    %v922 = vlaneseq
    %v923 = vshrl.u32 %v922, 7
    %v924 = vsub.s32 0, %v923
    %v925 = vrot.slane %v52, %v924
    %v927 = vsel %vm145, %v920, 0
    %v930 = vsel %vm145, %v921, 0
    %932 = vmatprep.subr.mxu0 0.0
    %933 = vmatpush1.msra.mxu0 %v48
    %934 = vmatprep.subr.mxu0 0.0
    %935 = vmatpush1.msra.mxu0 0.0
    %936 = vmatprep.subr.mxu0 0.0
    %937 = vmatpush1.msra.mxu0 0.0
    %938 = vmatprep.subr.mxu0 0.0
    %939 = vmatpush1.msra.mxu0 0.0
    %940 = vmatprep.subr.mxu0 0.0
    %941 = vmatpush1.msra.mxu0 0.0
    %942 = vmatprep.subr.mxu0 0.0
    %943 = vmatpush1.msra.mxu0 0.0
    %944 = vmatprep.subr.mxu0 0.0
    %945 = vmatpush1.msra.mxu0 0.0
    %946 = vmatprep.subr.mxu0 0.0
    %947 = vmatpush1.msra.mxu0 0.0
    %948 = vmatprep.subr.mxu0 0.0
    %949 = vmatpush1.msra.mxu0 0.0
    %950 = vmatprep.subr.mxu0 0.0
    %951 = vmatpush1.msra.mxu0 0.0
    %952 = vmatprep.subr.mxu0 0.0
    %953 = vmatpush1.msra.mxu0 0.0
    %954 = vmatprep.subr.mxu0 0.0
    %955 = vmatpush1.msra.mxu0 0.0
    %956 = vmatprep.subr.mxu0 0.0
    %957 = vmatpush1.msra.mxu0 0.0
    %958 = vmatprep.subr.mxu0 0.0
    %959 = vmatpush1.msra.mxu0 0.0
    %960 = vmatprep.subr.mxu0 0.0
    %961 = vmatpush1.msra.mxu0 0.0
    %962 = vmatprep.subr.mxu0 0.0
    %963 = vmatpush1.msra.mxu0 0.0
    %964 = vmatprep.subr.mxu0 0.0
    %965 = vmatpush1.msra.mxu0 0.0
    %966 = vmatprep.subr.mxu0 0.0
    %967 = vmatpush1.msra.mxu0 0.0
    %968 = vmatprep.subr.mxu0 0.0
    %969 = vmatpush1.msra.mxu0 0.0
    %970 = vmatprep.subr.mxu0 0.0
    %971 = vmatpush1.msra.mxu0 0.0
    %972 = vmatprep.subr.mxu0 0.0
    %973 = vmatpush1.msra.mxu0 0.0
    %974 = vmatprep.subr.mxu0 0.0
    %975 = vmatpush1.msra.mxu0 0.0
    %976 = vmatprep.subr.mxu0 0.0
    %977 = vmatpush1.msra.mxu0 0.0
    %978 = vmatprep.subr.mxu0 0.0
    %979 = vmatpush1.msra.mxu0 0.0
    %980 = vmatprep.subr.mxu0 0.0
    %981 = vmatpush1.msra.mxu0 0.0
    %982 = vmatprep.subr.mxu0 0.0
    %983 = vmatpush1.msra.mxu0 0.0
    %984 = vmatprep.subr.mxu0 0.0
    %985 = vmatpush1.msra.mxu0 0.0
    %986 = vmatprep.subr.mxu0 0.0
    %987 = vmatpush1.msra.mxu0 0.0
    %988 = vmatprep.subr.mxu0 0.0
    %989 = vmatpush1.msra.mxu0 0.0
    %990 = vmatprep.subr.mxu0 0.0
    %991 = vmatpush1.msra.mxu0 0.0
    %992 = vmatprep.subr.mxu0 0.0
    %993 = vmatpush1.msra.mxu0 0.0
    %994 = vmatprep.subr.mxu0 0.0
    %995 = vmatpush1.msra.mxu0 0.0
    %996 = vmatprep.mubr.f32.mxu0 0.0
    %997 = vmatmul.mubr.f32.gmra.mrb[0].mxu0 %v927
    %v998 = vpop.f32.mrb[0].mxu0
    %v999 = vadd.f32 %v925, %v998
    %v1000 = vpop.f32.mrb[0].mxu0
    %1001 = vmatprep.mubr.f32.mxu0 0.0
    %1002 = vmatmul.mubr.f32.gmra.mrb[0].mxu0 %v930
    %v1003 = vpop.f32.mrb[0].mxu0
    %v1004 = vadd.f32 %v925, %v1003
    %v1005 = vpop.f32.mrb[0].mxu0
    %1006 = vdwg.mxu0
    %1007 = vst.msk [vmem:[%s2] sm:$0xff] %vm145, %v999
    %1008 = vst.msk [vmem:[%s2 + $0x8] sm:$0xff] %vm145, %v1004
    // Predicated region
    $region18: #{tpu_custom_call.1} parent=1 // pred_check
      _
    $region19: #{tpu_custom_call.1} parent=1 // pred_check_branch
      %1010 = sbr.rel (0) target = $region21
    $region20: #{tpu_custom_call.1} parent=1 // pred_region
      _
    $region21: #{tpu_custom_call.1} parent=1 // pred_fallthru
      _
    // Predicated region
    $region22: #{tpu_custom_call.1} parent=1 // pred_check
      _
    $region23: #{tpu_custom_call.1} parent=1 // pred_check_branch
      %1012 = sbr.rel (0) target = $region25
    $region24: #{tpu_custom_call.1} parent=1 // pred_region
      _
    $region25: #{tpu_custom_call.1} parent=1 // pred_fallthru
      _
    %1013 = vsyncpa [#allocation3], 1
    %1014 = vsyncpa [#allocation5], 1

</llo_original>
